<compile_context>
chip_gen: v6e
topology: v6e:2x2x1
jax: 0.10.0
libtpu: 0.0.40
codegen_flags: <defaults>
</compile_context>

<pallas_src>
import math

import jax
import jax.numpy as jnp
from jax.experimental import pallas as pl
from jax.experimental.pallas import tpu as pltpu

_LANE = 128


def _row_dot_f32(x_ref, w_ref):
    """sum_d x[b, c, d] * w[0, c, d] over the current D block, in f32.

    x_ref: (TB, C, TD) block, w_ref: (1, C, TD) block  ->  (TB, C) f32.
    """
    td = x_ref.shape[-1]
    if td > _LANE and td % _LANE == 0:
        # Reduce each 128-lane chunk immediately into a small (TB, C) value:
        # the cross-lane reduce uses the XLU slot (slack under an HBM-bound
        # roofline) and avoids a full (TB, C, 128) f32 accumulator load+store
        # per chunk (vst-slot pressure, esp. on v7x).
        acc = None
        for k in range(td // _LANE):
            lo = k * _LANE
            prod = (x_ref[..., lo:lo + _LANE].astype(jnp.float32)
                    * w_ref[..., lo:lo + _LANE].astype(jnp.float32))
            part = jnp.sum(prod, axis=-1)                      # (TB, C)
            acc = part if acc is None else acc + part
        return acc
    prod = x_ref[...].astype(jnp.float32) * w_ref[...].astype(jnp.float32)
    return jnp.sum(prod, axis=-1)                              # (TB, C)


def _groupwise_linear_kernel(x_ref, w_ref, b_ref, out_ref, acc_ref):
    # Grid: (batch tiles [parallel], D tiles [arbitrary, innermost]).
    # x_ref: (TB, C, TD)  w_ref: (1, C, TD)  b_ref: (1, C)
    # out_ref: (TB, C)    acc_ref: (TB, C) f32 scratch
    k = pl.program_id(1)

    @pl.when(k == 0)
    def _init():
        acc_ref[...] = jnp.zeros_like(acc_ref)

    acc_ref[...] += _row_dot_f32(x_ref, w_ref)

    @pl.when(k == pl.num_programs(1) - 1)
    def _finalize():
        out_ref[...] = (acc_ref[...]
                        + b_ref[...].astype(jnp.float32)).astype(out_ref.dtype)


def groupwise_linear(x, W, b, *, block_b=None, block_d=None,
                     vmem_limit_bytes=None):
    """GroupWiseLinear forward. x: (B, C, D), W: (1, C, D), b: (1, C) -> (B, C)."""
    B, C, D = x.shape
    assert W.shape == (1, C, D), W.shape
    assert b.shape == (1, C), b.shape

    out_dtype = jnp.result_type(x.dtype, W.dtype, b.dtype)
    x_item = jnp.dtype(x.dtype).itemsize
    w_item = jnp.dtype(W.dtype).itemsize
    b_item = jnp.dtype(b.dtype).itemsize
    out_item = jnp.dtype(out_dtype).itemsize

    # Working-set budget: fits under v7x's 64 MiB physical VMEM with headroom;
    # v5e/v6e get an explicit vmem_limit_bytes above their 16/32 MiB scoped
    # defaults, so the f32 intermediates are budgeted rather than silently
    # overshooting.
    budget = 32 * 1024 * 1024
    target_x_tile = 8 * 1024 * 1024       # amortizes ~0.35 us per grid step

    def working_set(tb, td):
        chunk = _LANE if (td > _LANE and td % _LANE == 0) else td
        return (2 * tb * C * td * x_item          # x tile, double-buffered
                + 2 * C * td * w_item             # W tile (dbl-buffered alloc)
                + 2 * C * b_item                  # bias
                + 2 * tb * C * out_item           # out tile
                + tb * C * 4                      # f32 accumulator scratch
                + 3 * tb * C * chunk * 4)         # per-chunk f32 casts/product

    # ---- D (reduction) tile: engaged only when even an 8-row full-D tile
    # would blow the budget.  Partial D blocks would fold DMA garbage into the
    # reduction, so only multiples of 128 that divide D exactly are allowed.
    if block_d is not None:
        td = int(block_d)
        assert D % td == 0 and (td == D or td % _LANE == 0), \
            "block_d must divide D and be a multiple of 128 (or equal D)"
    else:
        td = D
        if working_set(8, D) > budget and D % _LANE == 0:
            cands = [m for m in range(_LANE, D, _LANE)
                     if D % m == 0 and working_set(8, m) <= budget]
            if cands:
                td = max(cands)
    n_d = D // td

    # ---- batch tile: big enough to amortize per-step overhead, small enough
    # for the budget; multiple of 8 (or == B) so the (tb, C) output block
    # satisfies the (8, 128) sublane constraint.  No host-side padding: the
    # final block may be ragged (masked writeback).
    if block_b is not None:
        tb = int(block_b)
        assert tb == B or tb % 8 == 0, "block_b must be a multiple of 8 or == B"
    else:
        chunk = _LANE if (td > _LANE and td % _LANE == 0) else td
        per_row = (2 * C * td * x_item + 2 * C * out_item + C * 4
                   + 3 * C * chunk * 4)
        fixed = 2 * C * td * w_item + 2 * C * b_item
        tb_budget = max(8, (budget - fixed) // max(1, per_row))
        tb_target = max(1, target_x_tile // max(1, C * td * x_item))
        tb = int(min(tb_target, tb_budget))
        if tb >= B:
            tb = B
            if B >= 16:
                # v7x megacore: make sure both TensorCores get a batch block
                # even when the whole problem fits in one tile.
                tb = max(8, ((pl.cdiv(B, 2) + 7) // 8) * 8)
        else:
            tb = max(8, (tb // 8) * 8)

    n_b = pl.cdiv(B, tb)
    grid = (n_b, n_d)

    if vmem_limit_bytes is None:
        ws = working_set(tb, td)
        vmem_limit_bytes = int(min(48 * 1024 * 1024,
                                   max(int(ws * 1.5), 16 * 1024 * 1024)))

    out = pl.pallas_call(
        _groupwise_linear_kernel,
        out_shape=jax.ShapeDtypeStruct((B, C), out_dtype),
        grid=grid,
        in_specs=[
            pl.BlockSpec((tb, C, td), lambda i, k: (i, 0, k)),   # x: B x D tiles
            pl.BlockSpec((1, C, td), lambda i, k: (0, 0, k)),    # W: D tiles, B-resident
            pl.BlockSpec((1, C), lambda i, k: (0, 0)),           # bias: resident
        ],
        out_specs=pl.BlockSpec((tb, C), lambda i, k: (i, 0)),
        scratch_shapes=[pltpu.VMEM((tb, C), jnp.float32)],
        compiler_params=pltpu.CompilerParams(
            dimension_semantics=("parallel", "arbitrary"),
            vmem_limit_bytes=vmem_limit_bytes,
        ),
    )(x, W, b)
    return out


def reference(x, W, b):
    out_dtype = jnp.result_type(x.dtype, W.dtype, b.dtype)
    xf = x.astype(jnp.float32)
    wf = W.astype(jnp.float32)
    bf = b.astype(jnp.float32)
    return (jnp.sum(wf * xf, axis=-1) + bf).astype(out_dtype)


if __name__ == "__main__":
    # 1) Small shapes consistent with the module's forward:
    #    batch=2, num_class=8, hidden_dim=32.
    B, num_class, hidden_dim = 2, 8, 32

    key = jax.random.PRNGKey(0)
    kx, kw, kb = jax.random.split(key, 3)

    # Deterministic parameter init mirroring reset_parameters():
    # uniform(-stdv, stdv) with stdv = 1/sqrt(hidden_dim)
    stdv = 1.0 / math.sqrt(hidden_dim)
    W = jax.random.uniform(kw, (1, num_class, hidden_dim), jnp.float32,
                           minval=-stdv, maxval=stdv)
    b = jax.random.uniform(kb, (1, num_class), jnp.float32,
                           minval=-stdv, maxval=stdv)
    x = jax.random.normal(kx, (B, num_class, hidden_dim), jnp.float32)

    out = jax.block_until_ready(groupwise_linear(x, W, b))
    ref = reference(x, W, b)
    assert out.shape == (B, num_class)
    assert jnp.allclose(out, ref, atol=1e-5, rtol=1e-5), "mismatch (f32)"

    # 2) bf16 x in HBM + f32 W/bias (recommended caller contract), staged
    #    (D % 128 == 0) reduction, and a ragged final batch block (B=20,
    #    tb=16): checks that masked partial-block writeback is correct
    #    without any host-side padding.
    B2, C2, D2 = 20, 16, 256
    x2 = jax.random.normal(jax.random.fold_in(key, 1), (B2, C2, D2),
                           jnp.float32).astype(jnp.bfloat16)
    W2 = jax.random.uniform(jax.random.fold_in(key, 2), (1, C2, D2),
                            jnp.float32, minval=-stdv, maxval=stdv)
    b2 = jax.random.uniform(jax.random.fold_in(key, 3), (1, C2),
                            jnp.float32, minval=-stdv, maxval=stdv)
    out2 = jax.block_until_ready(groupwise_linear(x2, W2, b2))
    ref2 = reference(x2, W2, b2)
    assert out2.shape == (B2, C2)
    assert jnp.allclose(out2.astype(jnp.float32), ref2.astype(jnp.float32),
                        atol=5e-2, rtol=5e-2), "mismatch (bf16 x / f32 W)"

    # 3) D-tiled (reduction grid axis) path with pl.when init/finalize,
    #    forced via explicit overrides at a small shape.
    B3, C3, D3 = 16, 8, 512
    x3 = jax.random.normal(jax.random.fold_in(key, 4), (B3, C3, D3), jnp.float32)
    W3 = jax.random.uniform(jax.random.fold_in(key, 5), (1, C3, D3),
                            jnp.float32, minval=-stdv, maxval=stdv)
    b3 = jax.random.uniform(jax.random.fold_in(key, 6), (1, C3),
                            jnp.float32, minval=-stdv, maxval=stdv)
    out3 = jax.block_until_ready(
        groupwise_linear(x3, W3, b3, block_b=8, block_d=128))
    ref3 = reference(x3, W3, b3)
    assert out3.shape == (B3, C3)
    assert jnp.allclose(out3, ref3, atol=1e-4, rtol=1e-4), "mismatch (D-tiled)"

    print("KERNEL_OK")
</pallas_src>

<mosaic_0001>
module attributes {stable_mosaic.version = 11 : i64} {
  func.func @_groupwise_linear_kernel(%arg0: i32, %arg1: i32, %arg2: memref<2x8x32xf32, #tpu.memory_space<vmem>>, %arg3: memref<1x8x32xf32, #tpu.memory_space<vmem>>, %arg4: memref<1x8xf32, #tpu.memory_space<vmem>>, %arg5: memref<2x8xf32, #tpu.memory_space<vmem>>, %arg6: memref<2x8xf32, #tpu.memory_space<vmem>>) attributes {dimension_semantics = [#tpu.dimension_semantics<parallel>, #tpu.dimension_semantics<arbitrary>], iteration_bounds = array<i64: 1, 1>, scalar_prefetch = 0 : i64, scratch_operands = 1 : i64, tpu.core_type = #tpu.core_type<tc>, window_params = [{transform_indices = @transform_0, window_bounds = array<i64: 2, 8, 32>}, {transform_indices = @transform_1, window_bounds = array<i64: 1, 8, 32>}, {pipeline_mode = #tpu.pipeline_mode<synchronous>, transform_indices = @transform_2, window_bounds = array<i64: 1, 8>}, {transform_indices = @transform_3, window_bounds = array<i64: 2, 8>}]} {
    %c0_i32 = arith.constant 0 : i32
    %0 = arith.cmpi eq, %arg1, %c0_i32 : i32
    %1 = arith.extui %0 : i1 to i32
    %c0_i32_0 = arith.constant 0 : i32
    %2 = arith.cmpi ne, %1, %c0_i32_0 : i32
    scf.if %2 {
      %cst_12 = arith.constant 0.000000e+00 : f32
      %14 = vector.broadcast %cst_12 : f32 to vector<2x8xf32>
      %c0_13 = arith.constant 0 : index
      %c0_14 = arith.constant 0 : index
      %15 = vector.load %arg6[%c0_13, %c0_14] : memref<2x8xf32, #tpu.memory_space<vmem>>, vector<2x8xf32>
      tpu.vector_store %arg6[%c0_13, %c0_14], %14 {strides = array<i32>} : memref<2x8xf32, #tpu.memory_space<vmem>>, vector<2x8xf32>,
    } else {
    }
    %c0 = arith.constant 0 : index
    %c0_1 = arith.constant 0 : index
    %3 = vector.load %arg6[%c0, %c0_1] : memref<2x8xf32, #tpu.memory_space<vmem>>, vector<2x8xf32>
    %c0_2 = arith.constant 0 : index
    %c0_3 = arith.constant 0 : index
    %c0_4 = arith.constant 0 : index
    %4 = vector.load %arg2[%c0_2, %c0_3, %c0_4] : memref<2x8x32xf32, #tpu.memory_space<vmem>>, vector<2x8x32xf32>
    %c0_5 = arith.constant 0 : index
    %c0_6 = arith.constant 0 : index
    %c0_7 = arith.constant 0 : index
    %5 = vector.load %arg3[%c0_5, %c0_6, %c0_7] : memref<1x8x32xf32, #tpu.memory_space<vmem>>, vector<1x8x32xf32>
    %6 = vector.broadcast %5 : vector<1x8x32xf32> to vector<2x8x32xf32>
    %7 = arith.mulf %4, %6 : vector<2x8x32xf32>
    %cst = arith.constant dense<0.000000e+00> : vector<2x8xf32>
    %8 = vector.multi_reduction <add>, %7, %cst [2] : vector<2x8x32xf32> to vector<2x8xf32>
    %9 = arith.addf %3, %8 : vector<2x8xf32>
    %c0_8 = arith.constant 0 : index
    %c0_9 = arith.constant 0 : index
    %10 = vector.load %arg6[%c0_8, %c0_9] : memref<2x8xf32, #tpu.memory_space<vmem>>, vector<2x8xf32>
    tpu.vector_store %arg6[%c0_8, %c0_9], %9 {strides = array<i32>} : memref<2x8xf32, #tpu.memory_space<vmem>>, vector<2x8xf32>,
    %c0_i32_10 = arith.constant 0 : i32
    %11 = arith.cmpi eq, %arg1, %c0_i32_10 : i32
    %12 = arith.extui %11 : i1 to i32
    %c0_i32_11 = arith.constant 0 : i32
    %13 = arith.cmpi ne, %12, %c0_i32_11 : i32
    scf.if %13 {
      %c0_12 = arith.constant 0 : index
      %c0_13 = arith.constant 0 : index
      %14 = vector.load %arg6[%c0_12, %c0_13] : memref<2x8xf32, #tpu.memory_space<vmem>>, vector<2x8xf32>
      %c0_14 = arith.constant 0 : index
      %c0_15 = arith.constant 0 : index
      %15 = vector.load %arg4[%c0_14, %c0_15] : memref<1x8xf32, #tpu.memory_space<vmem>>, vector<1x8xf32>
      %16 = vector.broadcast %15 : vector<1x8xf32> to vector<2x8xf32>
      %17 = arith.addf %14, %16 : vector<2x8xf32>
      %c0_16 = arith.constant 0 : index
      %c0_17 = arith.constant 0 : index
      %18 = vector.load %arg5[%c0_16, %c0_17] : memref<2x8xf32, #tpu.memory_space<vmem>>, vector<2x8xf32>
      tpu.vector_store %arg5[%c0_16, %c0_17], %17 {strides = array<i32>} : memref<2x8xf32, #tpu.memory_space<vmem>>, vector<2x8xf32>,
    } else {
    }
    return
  }
  func.func @transform_0(%arg0: i32, %arg1: i32) -> (i32, i32, i32) {
    %c0_i32 = arith.constant 0 : i32
    %c0_i32_0 = arith.constant 0 : i32
    return %arg0, %c0_i32, %arg1 : i32, i32, i32
  }
  func.func @transform_1(%arg0: i32, %arg1: i32) -> (i32, i32, i32) {
    %c0_i32 = arith.constant 0 : i32
    %c0_i32_0 = arith.constant 0 : i32
    %c0_i32_1 = arith.constant 0 : i32
    return %c0_i32, %c0_i32_0, %arg1 : i32, i32, i32
  }
  func.func @transform_2(%arg0: i32, %arg1: i32) -> (i32, i32) {
    %c0_i32 = arith.constant 0 : i32
    %c0_i32_0 = arith.constant 0 : i32
    %c0_i32_1 = arith.constant 0 : i32
    return %c0_i32, %c0_i32_0 : i32, i32
  }
  func.func @transform_3(%arg0: i32, %arg1: i32) -> (i32, i32) {
    %c0_i32 = arith.constant 0 : i32
    %c0_i32_0 = arith.constant 0 : i32
    return %arg0, %c0_i32 : i32, i32
  }
}

</mosaic_0001>

<llo_original>
// kernel: tpu_custom_call.1
$region0: #{tpu_custom_call.1}
  #allocation0 [shape = 'u32[]', space=smem, size = 0x4, offset = 0x4, fixed_abs, tag = 'smem constant byte address 0x4 - core index']
  #allocation1 [shape = 'u32[144,128]{1,0:T(1,128)}', space=vmem, size = 0x12000, scoped, tag = 'internal scratch']
  #allocation2 [shape = 'f32[2,8]{1,0:T(2,128)}', space=vmem, size = 0x400, scoped, tag = 'scratch operand']
  %s0 = inlined_call_operand.hbm [shape: f32[2,8,32], index: 0, kind: input, shape index: {}]
  %s1 = inlined_call_operand.hbm [shape: f32[1,8,32], index: 1, kind: input, shape index: {}]
  %s2 = inlined_call_operand.vmem [shape: f32[1,8], index: 2, kind: input, shape index: {}]
  %s3 = inlined_call_operand.hbm [shape: f32[2,8], index: 3, kind: output, shape index: {}]
  %s4 = sld [smem:[#allocation0]]
  $region38: #{tpu_custom_call.1} parent=0
    _
  %s6 = ssub.s32 1, %s4
  %s7 = scalar_select 0, %s6, %s4
  $region1: #{tpu_custom_call.1} parent=0
    #allocation3 [shape = 'u8[8192]{0}', space=vmem, size = 0x2000, scoped, tag = 'input window, operand 0, single buffered']
    #allocation4 [shape = 's32[1]{0}', space=sflag, size = 0x4, scoped, tag = 'scoped memory for tpu_custom_call.1']
    #allocation5 [shape = 's32[1]{0}', space=sflag, size = 0x4, scoped, tag = 'scoped memory for tpu_custom_call.1']
    #allocation6 [shape = 'u8[4096]{0}', space=vmem, size = 0x1000, scoped, tag = 'input window, operand 1, single buffered']
    #allocation7 [shape = 's32[1]{0}', space=sflag, size = 0x4, scoped, tag = 'scoped memory for tpu_custom_call.1']
    #allocation8 [shape = 'u8[1024]{0}', space=vmem, size = 0x400, scoped, tag = 'output window, operand 0, single buffered']
    %8 = vsyncpa [#allocation4], 0
    %9 = vsyncpa [#allocation7], 0
    %10 = vsyncpa [#allocation5], 0
    // Predicated region
    $region2: #{tpu_custom_call.1} parent=1 // pred_check
      _
    $region3: #{tpu_custom_call.1} parent=1 // pred_check_branch
      %12 = sbr.rel (0) target = $region5
    $region4: #{tpu_custom_call.1} parent=1 // pred_region
      %s14 = ssub.s32 256, 256
      %15 = vsyncadd [#allocation4], %s14
      %s16 = sshll.u32 [#allocation3], 4
      %s17 = int_to_ptr.vmem [resolvable:$true] %s16
      %22 = dma.hbm_to_vmem [thread:$0]  %s0, 256, %s17, [#allocation4], 128, 128, 8
    $region5: #{tpu_custom_call.1} parent=1 // pred_fallthru
      _
    // Predicated region
    $region6: #{tpu_custom_call.1} parent=1 // pred_check
      _
    $region7: #{tpu_custom_call.1} parent=1 // pred_check_branch
      %24 = sbr.rel (0) target = $region9
    $region8: #{tpu_custom_call.1} parent=1 // pred_region
      %s26 = ssub.s32 128, 128
      %27 = vsyncadd [#allocation7], %s26
      %s29 = sshll.u32 [#allocation6], 4
      %s30 = int_to_ptr.vmem [resolvable:$true] %s29
      %32 = dma.hbm_to_vmem [thread:$0]  %s1, 128, %s30, [#allocation7]
    $region9: #{tpu_custom_call.1} parent=1 // pred_fallthru
      _
    // Predicated region
    $region10: #{tpu_custom_call.1} parent=1 // pred_check
      _
    $region11: #{tpu_custom_call.1} parent=1 // pred_check_branch
      %34 = sbr.rel (0) target = $region13
    $region12: #{tpu_custom_call.1} parent=1 // pred_region
      _
    $region13: #{tpu_custom_call.1} parent=1 // pred_fallthru
      _
    // Predicated region
    $region14: #{tpu_custom_call.1} parent=1 // pred_check
      _
    $region15: #{tpu_custom_call.1} parent=1 // pred_check_branch
      %36 = sbr.rel (0) target = $region17
    $region16: #{tpu_custom_call.1} parent=1 // pred_region
      %37 = dma.done [#allocation4], 256
    $region17: #{tpu_custom_call.1} parent=1 // pred_fallthru
      _
    // Predicated region
    $region18: #{tpu_custom_call.1} parent=1 // pred_check
      _
    $region19: #{tpu_custom_call.1} parent=1 // pred_check_branch
      %39 = sbr.rel (0) target = $region21
    $region20: #{tpu_custom_call.1} parent=1 // pred_region
      %40 = dma.done [#allocation7], 128
    $region21: #{tpu_custom_call.1} parent=1 // pred_fallthru
      _
    %p41 = scmp.eq.s32.totalorder 0, 0
    // Predicated region
    $region22: #{tpu_custom_call.1} parent=1 // pred_check
      %p42 = pneg %p41
    $region23: #{tpu_custom_call.1} parent=1 // pred_check_branch
      %44 = sbr.rel (%p42) target = $region25
    $region24: #{tpu_custom_call.1} parent=1 // pred_region
      %vm45 = vcmask 58368
      %46 = vst.msk [vmem:[#allocation2] sm:$0x3] %vm45, 0.0
    $region25: #{tpu_custom_call.1} parent=1 // pred_fallthru
      _
    %v47 = vld [vmem:[#allocation2] sm:$0x3]
    %v48 = vld [vmem:[#allocation3] sm:$0xff]
    %v49 = vld [vmem:[#allocation3 + $0x8] sm:$0xff]
    %v50 = vld [vmem:[#allocation6] sm:$0xff]
    %v51 = vmul.f32 %v48, %v50
    %v52 = vmul.f32 %v49, %v50
    %vm53 = vcmask 261120
    %v54 = vsel %vm53, %v51, 0.0
    %55 = vadd.xlane.f32.xlu0 %v54
    %v56 = vpop.xlane.xlu0 %55
    %v57 = vsel %vm53, %v52, 0.0
    %58 = vadd.xlane.f32.xlu0 %v57
    %v59 = vpop.xlane.xlu0 %58
    %v62 = vlaneseq
    %v63 = vand.u32 %v62, 127
    %v64 = vlaneseq
    %v65 = vshrl.u32 %v64, 7
    %v66 = vsub.s32 %v63, %v65
    %v67 = vrot.slane %v56, %v66
    %v68 = vlaneseq
    %v69 = vshrl.u32 %v68, 7
    %v70 = vsub.s32 %v63, %v69
    %v71 = vrot.slane %v59, %v70
    %vm72 = vcmask 1041409
    %v73 = vsel %vm72, %v71, %v67
    %v75 = vadd.f32 %v47, %v73
    %vm76 = vcmask 58368
    %77 = vst.msk [vmem:[#allocation2] sm:$0x3] %vm76, %v75
    // Predicated region
    $region26: #{tpu_custom_call.1} parent=1 // pred_check
      %p78 = pneg %p41
    $region27: #{tpu_custom_call.1} parent=1 // pred_check_branch
      %80 = sbr.rel (%p78) target = $region29
    $region28: #{tpu_custom_call.1} parent=1 // pred_region
      %v81 = vld [vmem:[#allocation2] sm:$0x3]
      %v82 = vld [vmem:[%s2] sm:$0x1]
      %v84 = vlaneseq
      %v85 = vshrl.u32 %v84, 7
      %v86 = vsub.s32 0, %v85
      %v87 = vrot.slane %v82, %v86
      %v89 = vadd.f32 %v81, %v87
      %90 = vst.msk [vmem:[#allocation8] sm:$0x3] %vm76, %v89
    $region29: #{tpu_custom_call.1} parent=1 // pred_fallthru
      _
    // Predicated region
    $region30: #{tpu_custom_call.1} parent=1 // pred_check
      _
    $region31: #{tpu_custom_call.1} parent=1 // pred_check_branch
      %92 = sbr.rel (0) target = $region33
    $region32: #{tpu_custom_call.1} parent=1 // pred_region
      %s94 = ssub.s32 32, 32
      %95 = vsyncadd [#allocation5], %s94
      %s97 = sshll.u32 [#allocation8], 4
      %s98 = int_to_ptr.vmem [resolvable:$true] %s97
      %100 = dma.vmem_to_hbm [thread:$0]  %s98, 32, %s3, [#allocation5]
    $region33: #{tpu_custom_call.1} parent=1 // pred_fallthru
      _
    // Predicated region
    $region34: #{tpu_custom_call.1} parent=1 // pred_check
      _
    $region35: #{tpu_custom_call.1} parent=1 // pred_check_branch
      %102 = sbr.rel (0) target = $region37
    $region36: #{tpu_custom_call.1} parent=1 // pred_region
      %103 = dma.done [#allocation5], 32
    $region37: #{tpu_custom_call.1} parent=1 // pred_fallthru
      _
    %104 = vsyncpa [#allocation4], 1
    %105 = vsyncpa [#allocation7], 1
    %106 = vsyncpa [#allocation5], 1

</llo_original>
